<compile_context>
chip_gen: v5e
topology: v5e:2x2
jax: 0.10.0
libtpu: 0.0.40
codegen_flags: <defaults>
</compile_context>

<pallas_src>
import jax
import jax.numpy as jnp
from jax.experimental import pallas as pl
from jax.experimental.pallas import tpu as pltpu


_SUBLANE = 8                 # f32 sublane tile
_K = 9 * _SUBLANE            # im2col patch rows: 9 taps x 8-sublane-aligned slots


def _fused_cnn_features(x_nchw, w1, b1, w2, b2):
    """conv1(3x3 same) -> relu -> conv2(3x3 same), fused in one pallas_call.

    Returns (conv1_out, conv2_out) in NCHW (the PyTorch hook outputs).
    """
    N, Cin, H, W = x_nchw.shape
    C1 = w1.shape[-1]
    C2 = w2.shape[-1]
    HW = H * W
    # Tap-slot stride and w2.reshape(9*C1, C2) both hard-code an 8-row slot per tap;
    # this is only consistent when C1 == 8, so assert exactly that (not just % 8 == 0).
    assert C1 == _SUBLANE and C2 % _SUBLANE == 0
    assert Cin <= _SUBLANE
    assert HW % 128 == 0                 # lane-dense flattened spatial axis
    assert (HW & (HW - 1)) == 0          # per-image flat index via bitmask
    assert (W & (W - 1)) == 0            # column index via bitmask

    # Batch packing: G grid steps, B images per step concatenated on the lane axis.
    # Keep G == 2 when possible so dimension_semantics=("parallel",) feeds both
    # TensorCores on v7x; on single-TC v5e/v6e the extra step costs only ~0.35 us.
    G = 2 if (N >= 2 and N % 2 == 0) else 1
    B = N // G
    BHW = B * HW

    # Pad input channels Cin -> 8 once in the wrapper (removes in-kernel zero fill
    # and masked patch stores), then pack B images per grid step onto lanes.
    x_flat = x_nchw.reshape(N, Cin, HW)
    x_pad = jnp.pad(x_flat, ((0, 0), (0, _SUBLANE - Cin), (0, 0)))        # (N, 8, HW)
    x_packed = (x_pad.reshape(G, B, _SUBLANE, HW)
                .transpose(0, 2, 1, 3)
                .reshape(G, _SUBLANE, BHW))                                # (G, 8, B*HW)

    # im2col weight matrices (tiny one-time ops on weights, not activations).
    # Patch-matrix row layout is tap*8 + ci; pad conv1's input channels 4 -> 8.
    w1p = jnp.pad(w1, ((0, 0), (0, 0), (0, _SUBLANE - Cin), (0, 0)))      # (3,3,8,C1)
    w1m = w1p.reshape(_K, C1).T                                           # (C1, 72)
    w2m = w2.reshape(9 * C1, C2).T                                        # (C2, 72)
    b1c = b1.reshape(C1, 1)
    b2c = b2.reshape(C2, 1)

    def kernel(x_ref, w1_ref, b1_ref, w2_ref, b2_ref, o1_ref, o2_ref,
               p1_ref, p2_ref):
        # Per-image pixel / column indices of every lane in the packed slab.
        flat = jax.lax.broadcasted_iota(jnp.int32, (1, BHW), 1)
        f = flat & (HW - 1)          # flat pixel index within its own image
        col = flat & (W - 1)         # column index within its own image

        # Hoisted border masks (implement the zero "same" padding by masking the
        # wrap-around / cross-image leakage of the lane rolls). Computed once per
        # grid step and shared by both patch builds.
        valids = {}
        for kh in range(3):
            dh = kh - 1
            for kw in range(3):
                dw = kw - 1
                if dh == 0 and dw == 0:
                    continue
                valid = None
                if dh > 0:
                    valid = f < ((H - dh) * W)
                elif dh < 0:
                    valid = f >= ((-dh) * W)
                if dw > 0:
                    c = col < (W - dw)
                    valid = c if valid is None else (valid & c)
                elif dw < 0:
                    c = col >= (-dw)
                    valid = c if valid is None else (valid & c)
                valids[(dh, dw)] = valid

        def build_patches(p_ref, inp):
            # inp: (8, B*HW). Writes the (72, B*HW) im2col patch matrix into p_ref.
            # Each tap = one XLU lane-roll + one VPU mask; all stores are full-tile,
            # 8-sublane aligned, unmasked.
            for kh in range(3):
                dh = kh - 1
                for kw in range(3):
                    dw = kw - 1
                    t = kh * 3 + kw
                    if dh == 0 and dw == 0:
                        tap = inp
                    else:
                        shift = (-(dh * W + dw)) % BHW
                        tap = pltpu.roll(inp, shift=shift, axis=1)
                        tap = jnp.where(valids[(dh, dw)], tap, 0.0)
                    p_ref[pl.ds(t * _SUBLANE, _SUBLANE), :] = tap

        # ---------------- conv1 ----------------
        # Input channels already zero-padded to 8 in the wrapper -> no zero-fill.
        build_patches(p1_ref, x_ref[...])
        y1 = jnp.dot(w1_ref[...], p1_ref[...],
                     preferred_element_type=jnp.float32) + b1_ref[...]
        o1_ref[...] = y1.astype(o1_ref.dtype)          # hook "conv1" (pre-ReLU)

        # ------------- relu + conv2 (fused; y1 stays in VMEM) -------------
        # Second patch buffer: the build has no WAR dependency on conv1's dot, so it
        # overlaps the first MXU push and the o1 store.
        build_patches(p2_ref, jnp.maximum(y1, 0.0))
        y2 = jnp.dot(w2_ref[...], p2_ref[...],
                     preferred_element_type=jnp.float32) + b2_ref[...]
        o2_ref[...] = y2.astype(o2_ref.dtype)          # hook "conv2"

    out1, out2 = pl.pallas_call(
        kernel,
        out_shape=(jax.ShapeDtypeStruct((G, C1, BHW), jnp.float32),
                   jax.ShapeDtypeStruct((G, C2, BHW), jnp.float32)),
        grid=(G,),
        in_specs=[
            pl.BlockSpec((None, _SUBLANE, BHW), lambda g: (g, 0, 0)),
            pl.BlockSpec((C1, _K), lambda g: (0, 0)),
            pl.BlockSpec((C1, 1), lambda g: (0, 0)),
            pl.BlockSpec((C2, _K), lambda g: (0, 0)),
            pl.BlockSpec((C2, 1), lambda g: (0, 0)),
        ],
        out_specs=(
            pl.BlockSpec((None, C1, BHW), lambda g: (g, 0, 0)),
            pl.BlockSpec((None, C2, BHW), lambda g: (g, 0, 0)),
        ),
        scratch_shapes=[pltpu.VMEM((_K, BHW), jnp.float32),   # conv1 im2col buffer
                        pltpu.VMEM((_K, BHW), jnp.float32)],  # conv2 im2col buffer
        compiler_params=pltpu.CompilerParams(
            dimension_semantics=("parallel",)),               # batch across TCs on v7x
    )(x_packed, w1m, b1c, w2m, b2c)

    # Unpack lanes back to NCHW (cheap wrapper-side reshape/transpose on tiny arrays).
    f1 = out1.reshape(G, C1, B, HW).transpose(0, 2, 1, 3).reshape(N, C1, H, W)
    f2 = out2.reshape(G, C2, B, HW).transpose(0, 2, 1, 3).reshape(N, C2, H, W)
    return f1, f2


@jax.jit
def _model_forward(params, x_nchw):
    f1, f2 = _fused_cnn_features(x_nchw, params["w1"], params["b1"],
                                 params["w2"], params["b2"])
    return {"conv1": f1, "conv2": f2}


# --------------------------- FeatureExtractor port ---------------------------

class FeatureExtractor:
    """JAX/Pallas equivalent of the PyTorch FeatureExtractor.

    Runs the wrapped model's forward pass (output discarded) and returns a dict of
    the hooked intermediate layer outputs, keyed by layer name.
    """

    def __init__(self, params, layers):
        self.params = params
        self.layers = tuple(layers)
        self._features = {layer: jnp.zeros((0,), jnp.float32) for layer in layers}

    def __call__(self, x_nchw):
        feats = _model_forward(self.params, x_nchw)   # single jitted dispatch
        for layer in self.layers:
            if layer in feats:
                self._features[layer] = feats[layer]
        return dict(self._features)


# ----------------------------------- main ------------------------------------

def _ref_conv_nchw(x_nchw, w_hwio, b):
    out = jax.lax.conv_general_dilated(
        x_nchw, w_hwio, window_strides=(1, 1), padding="SAME",
        dimension_numbers=("NCHW", "HWIO", "NCHW"))
    return out + b.reshape(1, -1, 1, 1)


if __name__ == "__main__":
    key = jax.random.PRNGKey(0)
    k_x, k_w1, k_b1, k_w2, k_b2 = jax.random.split(key, 5)

    N, Cin, H, W = 2, 4, 16, 16
    C1 = 8

    x = jax.random.normal(k_x, (N, Cin, H, W), dtype=jnp.float32)

    params = {
        "w1": 0.1 * jax.random.normal(k_w1, (3, 3, Cin, C1), jnp.float32),
        "b1": 0.1 * jax.random.normal(k_b1, (C1,), jnp.float32),
        "w2": 0.1 * jax.random.normal(k_w2, (3, 3, C1, C1), jnp.float32),
        "b2": 0.1 * jax.random.normal(k_b2, (C1,), jnp.float32),
    }

    extractor = FeatureExtractor(params, layers=["conv1", "conv2"])
    feats = extractor(x)
    feats = jax.tree_util.tree_map(jax.block_until_ready, feats)

    # Lightweight correctness check against XLA's conv.
    ref1 = _ref_conv_nchw(x, params["w1"], params["b1"])
    ref2 = _ref_conv_nchw(jnp.maximum(ref1, 0.0), params["w2"], params["b2"])
    assert feats["conv1"].shape == (N, C1, H, W)
    assert feats["conv2"].shape == (N, C1, H, W)
    assert jnp.allclose(feats["conv1"], ref1, atol=1e-4, rtol=1e-4)
    assert jnp.allclose(feats["conv2"], ref2, atol=1e-4, rtol=1e-4)

    print("KERNEL_OK")
</pallas_src>

<mosaic_0001>
module attributes {stable_mosaic.version = 11 : i64} {
  func.func @kernel(%arg0: i32, %arg1: memref<1x8x256xf32, #tpu.memory_space<vmem>>, %arg2: memref<8x72xf32, #tpu.memory_space<vmem>>, %arg3: memref<8x1xf32, #tpu.memory_space<vmem>>, %arg4: memref<8x72xf32, #tpu.memory_space<vmem>>, %arg5: memref<8x1xf32, #tpu.memory_space<vmem>>, %arg6: memref<1x8x256xf32, #tpu.memory_space<vmem>>, %arg7: memref<1x8x256xf32, #tpu.memory_space<vmem>>, %arg8: memref<72x256xf32, #tpu.memory_space<vmem>>, %arg9: memref<72x256xf32, #tpu.memory_space<vmem>>) attributes {dimension_semantics = [#tpu.dimension_semantics<parallel>], iteration_bounds = array<i64: 2>, scalar_prefetch = 0 : i64, scratch_operands = 2 : i64, tpu.core_type = #tpu.core_type<tc>, window_params = [{transform_indices = @transform_0, window_bounds = array<i64: 1, 8, 256>}, {pipeline_mode = #tpu.pipeline_mode<synchronous>, transform_indices = @transform_1, window_bounds = array<i64: 8, 72>}, {pipeline_mode = #tpu.pipeline_mode<synchronous>, transform_indices = @transform_2, window_bounds = array<i64: 8, 1>}, {pipeline_mode = #tpu.pipeline_mode<synchronous>, transform_indices = @transform_3, window_bounds = array<i64: 8, 72>}, {pipeline_mode = #tpu.pipeline_mode<synchronous>, transform_indices = @transform_4, window_bounds = array<i64: 8, 1>}, {transform_indices = @transform_5, window_bounds = array<i64: 1, 8, 256>}, {transform_indices = @transform_6, window_bounds = array<i64: 1, 8, 256>}]} {
    %0 = tpu.iota {dimensions = array<i32: 1>} : vector<1x256xi32>
    %c255_i32 = arith.constant 255 : i32
    %1 = vector.broadcast %c255_i32 : i32 to vector<1x256xi32>
    %2 = arith.andi %0, %1 : vector<1x256xi32>
    %c15_i32 = arith.constant 15 : i32
    %3 = vector.broadcast %c15_i32 : i32 to vector<1x256xi32>
    %4 = arith.andi %0, %3 : vector<1x256xi32>
    %c16_i32 = arith.constant 16 : i32
    %5 = vector.broadcast %c16_i32 : i32 to vector<1x256xi32>
    %6 = arith.cmpi sge, %2, %5 : vector<1x256xi32>
    %c1_i32 = arith.constant 1 : i32
    %7 = vector.broadcast %c1_i32 : i32 to vector<1x256xi32>
    %8 = arith.cmpi sge, %4, %7 : vector<1x256xi32>
    %9 = arith.andi %6, %8 : vector<1x256xi1>
    %c16_i32_0 = arith.constant 16 : i32
    %10 = vector.broadcast %c16_i32_0 : i32 to vector<1x256xi32>
    %11 = arith.cmpi sge, %2, %10 : vector<1x256xi32>
    %c16_i32_1 = arith.constant 16 : i32
    %12 = vector.broadcast %c16_i32_1 : i32 to vector<1x256xi32>
    %13 = arith.cmpi sge, %2, %12 : vector<1x256xi32>
    %c15_i32_2 = arith.constant 15 : i32
    %14 = vector.broadcast %c15_i32_2 : i32 to vector<1x256xi32>
    %15 = arith.cmpi slt, %4, %14 : vector<1x256xi32>
    %16 = arith.andi %13, %15 : vector<1x256xi1>
    %c1_i32_3 = arith.constant 1 : i32
    %17 = vector.broadcast %c1_i32_3 : i32 to vector<1x256xi32>
    %18 = arith.cmpi sge, %4, %17 : vector<1x256xi32>
    %c15_i32_4 = arith.constant 15 : i32
    %19 = vector.broadcast %c15_i32_4 : i32 to vector<1x256xi32>
    %20 = arith.cmpi slt, %4, %19 : vector<1x256xi32>
    %c240_i32 = arith.constant 240 : i32
    %21 = vector.broadcast %c240_i32 : i32 to vector<1x256xi32>
    %22 = arith.cmpi slt, %2, %21 : vector<1x256xi32>
    %c1_i32_5 = arith.constant 1 : i32
    %23 = vector.broadcast %c1_i32_5 : i32 to vector<1x256xi32>
    %24 = arith.cmpi sge, %4, %23 : vector<1x256xi32>
    %25 = arith.andi %22, %24 : vector<1x256xi1>
    %c240_i32_6 = arith.constant 240 : i32
    %26 = vector.broadcast %c240_i32_6 : i32 to vector<1x256xi32>
    %27 = arith.cmpi slt, %2, %26 : vector<1x256xi32>
    %c240_i32_7 = arith.constant 240 : i32
    %28 = vector.broadcast %c240_i32_7 : i32 to vector<1x256xi32>
    %29 = arith.cmpi slt, %2, %28 : vector<1x256xi32>
    %c15_i32_8 = arith.constant 15 : i32
    %30 = vector.broadcast %c15_i32_8 : i32 to vector<1x256xi32>
    %31 = arith.cmpi slt, %4, %30 : vector<1x256xi32>
    %32 = arith.andi %29, %31 : vector<1x256xi1>
    %c0 = arith.constant 0 : index
    %c0_9 = arith.constant 0 : index
    %c0_10 = arith.constant 0 : index
    %33 = vector.load %arg1[%c0, %c0_9, %c0_10] : memref<1x8x256xf32, #tpu.memory_space<vmem>>, vector<1x8x256xf32>
    %34 = vector.shape_cast %33 : vector<1x8x256xf32> to vector<8x256xf32>
    %c17_i32 = arith.constant 17 : i32
    %35 = tpu.dynamic_rotate %34 by %c17_i32 dim 1 : vector<8x256xf32>, i32 -> vector<8x256xf32>
    %cst = arith.constant 0.000000e+00 : f32
    %36 = vector.shape_cast %9 : vector<1x256xi1> to vector<1x256xi1>
    %37 = vector.broadcast %36 : vector<1x256xi1> to vector<8x256xi1>
    %38 = vector.broadcast %cst : f32 to vector<8x256xf32>
    %39 = arith.select %37, %35, %38 : vector<8x256xi1>, vector<8x256xf32>
    %c0_11 = arith.constant 0 : index
    %c0_12 = arith.constant 0 : index
    %40 = vector.load %arg8[%c0_11, %c0_12] : memref<72x256xf32, #tpu.memory_space<vmem>>, vector<8x256xf32>
    tpu.vector_store %arg8[%c0_11, %c0_12], %39 {strides = array<i32>} : memref<72x256xf32, #tpu.memory_space<vmem>>, vector<8x256xf32>,
    %c16_i32_13 = arith.constant 16 : i32
    %41 = tpu.dynamic_rotate %34 by %c16_i32_13 dim 1 : vector<8x256xf32>, i32 -> vector<8x256xf32>
    %cst_14 = arith.constant 0.000000e+00 : f32
    %42 = vector.shape_cast %11 : vector<1x256xi1> to vector<1x256xi1>
    %43 = vector.broadcast %42 : vector<1x256xi1> to vector<8x256xi1>
    %44 = vector.broadcast %cst_14 : f32 to vector<8x256xf32>
    %45 = arith.select %43, %41, %44 : vector<8x256xi1>, vector<8x256xf32>
    %c8 = arith.constant 8 : index
    %c0_15 = arith.constant 0 : index
    %46 = vector.load %arg8[%c8, %c0_15] : memref<72x256xf32, #tpu.memory_space<vmem>>, vector<8x256xf32>
    tpu.vector_store %arg8[%c8, %c0_15], %45 {strides = array<i32>} : memref<72x256xf32, #tpu.memory_space<vmem>>, vector<8x256xf32>,
    %c15_i32_16 = arith.constant 15 : i32
    %47 = tpu.dynamic_rotate %34 by %c15_i32_16 dim 1 : vector<8x256xf32>, i32 -> vector<8x256xf32>
    %cst_17 = arith.constant 0.000000e+00 : f32
    %48 = vector.shape_cast %16 : vector<1x256xi1> to vector<1x256xi1>
    %49 = vector.broadcast %48 : vector<1x256xi1> to vector<8x256xi1>
    %50 = vector.broadcast %cst_17 : f32 to vector<8x256xf32>
    %51 = arith.select %49, %47, %50 : vector<8x256xi1>, vector<8x256xf32>
    %c16 = arith.constant 16 : index
    %c0_18 = arith.constant 0 : index
    %52 = vector.load %arg8[%c16, %c0_18] : memref<72x256xf32, #tpu.memory_space<vmem>>, vector<8x256xf32>
    tpu.vector_store %arg8[%c16, %c0_18], %51 {strides = array<i32>} : memref<72x256xf32, #tpu.memory_space<vmem>>, vector<8x256xf32>,
    %c1_i32_19 = arith.constant 1 : i32
    %53 = tpu.dynamic_rotate %34 by %c1_i32_19 dim 1 : vector<8x256xf32>, i32 -> vector<8x256xf32>
    %cst_20 = arith.constant 0.000000e+00 : f32
    %54 = vector.shape_cast %18 : vector<1x256xi1> to vector<1x256xi1>
    %55 = vector.broadcast %54 : vector<1x256xi1> to vector<8x256xi1>
    %56 = vector.broadcast %cst_20 : f32 to vector<8x256xf32>
    %57 = arith.select %55, %53, %56 : vector<8x256xi1>, vector<8x256xf32>
    %c24 = arith.constant 24 : index
    %c0_21 = arith.constant 0 : index
    %58 = vector.load %arg8[%c24, %c0_21] : memref<72x256xf32, #tpu.memory_space<vmem>>, vector<8x256xf32>
    tpu.vector_store %arg8[%c24, %c0_21], %57 {strides = array<i32>} : memref<72x256xf32, #tpu.memory_space<vmem>>, vector<8x256xf32>,
    %c32 = arith.constant 32 : index
    %c0_22 = arith.constant 0 : index
    %59 = vector.load %arg8[%c32, %c0_22] : memref<72x256xf32, #tpu.memory_space<vmem>>, vector<8x256xf32>
    tpu.vector_store %arg8[%c32, %c0_22], %34 {strides = array<i32>} : memref<72x256xf32, #tpu.memory_space<vmem>>, vector<8x256xf32>,
    %c255_i32_23 = arith.constant 255 : i32
    %60 = tpu.dynamic_rotate %34 by %c255_i32_23 dim 1 : vector<8x256xf32>, i32 -> vector<8x256xf32>
    %cst_24 = arith.constant 0.000000e+00 : f32
    %61 = vector.shape_cast %20 : vector<1x256xi1> to vector<1x256xi1>
    %62 = vector.broadcast %61 : vector<1x256xi1> to vector<8x256xi1>
    %63 = vector.broadcast %cst_24 : f32 to vector<8x256xf32>
    %64 = arith.select %62, %60, %63 : vector<8x256xi1>, vector<8x256xf32>
    %c40 = arith.constant 40 : index
    %c0_25 = arith.constant 0 : index
    %65 = vector.load %arg8[%c40, %c0_25] : memref<72x256xf32, #tpu.memory_space<vmem>>, vector<8x256xf32>
    tpu.vector_store %arg8[%c40, %c0_25], %64 {strides = array<i32>} : memref<72x256xf32, #tpu.memory_space<vmem>>, vector<8x256xf32>,
    %c241_i32 = arith.constant 241 : i32
    %66 = tpu.dynamic_rotate %34 by %c241_i32 dim 1 : vector<8x256xf32>, i32 -> vector<8x256xf32>
    %cst_26 = arith.constant 0.000000e+00 : f32
    %67 = vector.shape_cast %25 : vector<1x256xi1> to vector<1x256xi1>
    %68 = vector.broadcast %67 : vector<1x256xi1> to vector<8x256xi1>
    %69 = vector.broadcast %cst_26 : f32 to vector<8x256xf32>
    %70 = arith.select %68, %66, %69 : vector<8x256xi1>, vector<8x256xf32>
    %c48 = arith.constant 48 : index
    %c0_27 = arith.constant 0 : index
    %71 = vector.load %arg8[%c48, %c0_27] : memref<72x256xf32, #tpu.memory_space<vmem>>, vector<8x256xf32>
    tpu.vector_store %arg8[%c48, %c0_27], %70 {strides = array<i32>} : memref<72x256xf32, #tpu.memory_space<vmem>>, vector<8x256xf32>,
    %c240_i32_28 = arith.constant 240 : i32
    %72 = tpu.dynamic_rotate %34 by %c240_i32_28 dim 1 : vector<8x256xf32>, i32 -> vector<8x256xf32>
    %cst_29 = arith.constant 0.000000e+00 : f32
    %73 = vector.shape_cast %27 : vector<1x256xi1> to vector<1x256xi1>
    %74 = vector.broadcast %73 : vector<1x256xi1> to vector<8x256xi1>
    %75 = vector.broadcast %cst_29 : f32 to vector<8x256xf32>
    %76 = arith.select %74, %72, %75 : vector<8x256xi1>, vector<8x256xf32>
    %c56 = arith.constant 56 : index
    %c0_30 = arith.constant 0 : index
    %77 = vector.load %arg8[%c56, %c0_30] : memref<72x256xf32, #tpu.memory_space<vmem>>, vector<8x256xf32>
    tpu.vector_store %arg8[%c56, %c0_30], %76 {strides = array<i32>} : memref<72x256xf32, #tpu.memory_space<vmem>>, vector<8x256xf32>,
    %c239_i32 = arith.constant 239 : i32
    %78 = tpu.dynamic_rotate %34 by %c239_i32 dim 1 : vector<8x256xf32>, i32 -> vector<8x256xf32>
    %cst_31 = arith.constant 0.000000e+00 : f32
    %79 = vector.shape_cast %32 : vector<1x256xi1> to vector<1x256xi1>
    %80 = vector.broadcast %79 : vector<1x256xi1> to vector<8x256xi1>
    %81 = vector.broadcast %cst_31 : f32 to vector<8x256xf32>
    %82 = arith.select %80, %78, %81 : vector<8x256xi1>, vector<8x256xf32>
    %c64 = arith.constant 64 : index
    %c0_32 = arith.constant 0 : index
    %83 = vector.load %arg8[%c64, %c0_32] : memref<72x256xf32, #tpu.memory_space<vmem>>, vector<8x256xf32>
    tpu.vector_store %arg8[%c64, %c0_32], %82 {strides = array<i32>} : memref<72x256xf32, #tpu.memory_space<vmem>>, vector<8x256xf32>,
    %c0_33 = arith.constant 0 : index
    %c0_34 = arith.constant 0 : index
    %84 = vector.load %arg2[%c0_33, %c0_34] : memref<8x72xf32, #tpu.memory_space<vmem>>, vector<8x72xf32>
    %c0_35 = arith.constant 0 : index
    %c0_36 = arith.constant 0 : index
    %85 = vector.load %arg8[%c0_35, %c0_36] : memref<72x256xf32, #tpu.memory_space<vmem>>, vector<72x256xf32>
    %cst_37 = arith.constant dense<0.000000e+00> : vector<8x256xf32>
    %86 = tpu.matmul %84, %85, %cst_37 {dimension_numbers = #tpu.dot_dimension_numbers<[1], [0], [0], [1], [0, 0, 1, 1], [], []>} : vector<8x72xf32>, vector<72x256xf32>, vector<8x256xf32> -> vector<8x256xf32>
    %c0_38 = arith.constant 0 : index
    %c0_39 = arith.constant 0 : index
    %87 = vector.load %arg3[%c0_38, %c0_39] : memref<8x1xf32, #tpu.memory_space<vmem>>, vector<8x1xf32>
    %88 = vector.broadcast %87 : vector<8x1xf32> to vector<8x256xf32>
    %89 = arith.addf %86, %88 : vector<8x256xf32>
    %c0_40 = arith.constant 0 : index
    %c0_41 = arith.constant 0 : index
    %c0_42 = arith.constant 0 : index
    %90 = vector.load %arg6[%c0_40, %c0_41, %c0_42] : memref<1x8x256xf32, #tpu.memory_space<vmem>>, vector<1x8x256xf32>
    %91 = vector.shape_cast %90 : vector<1x8x256xf32> to vector<8x256xf32>
    %92 = vector.shape_cast %89 : vector<8x256xf32> to vector<1x8x256xf32>
    tpu.vector_store %arg6[%c0_40, %c0_41, %c0_42], %92 {strides = array<i32>} : memref<1x8x256xf32, #tpu.memory_space<vmem>>, vector<1x8x256xf32>,
    %cst_43 = arith.constant 0.000000e+00 : f32
    %93 = vector.broadcast %cst_43 : f32 to vector<8x256xf32>
    %94 = arith.maximumf %89, %93 : vector<8x256xf32>
    %c17_i32_44 = arith.constant 17 : i32
    %95 = tpu.dynamic_rotate %94 by %c17_i32_44 dim 1 : vector<8x256xf32>, i32 -> vector<8x256xf32>
    %cst_45 = arith.constant 0.000000e+00 : f32
    %96 = vector.shape_cast %9 : vector<1x256xi1> to vector<1x256xi1>
    %97 = vector.broadcast %96 : vector<1x256xi1> to vector<8x256xi1>
    %98 = vector.broadcast %cst_45 : f32 to vector<8x256xf32>
    %99 = arith.select %97, %95, %98 : vector<8x256xi1>, vector<8x256xf32>
    %c0_46 = arith.constant 0 : index
    %c0_47 = arith.constant 0 : index
    %100 = vector.load %arg9[%c0_46, %c0_47] : memref<72x256xf32, #tpu.memory_space<vmem>>, vector<8x256xf32>
    tpu.vector_store %arg9[%c0_46, %c0_47], %99 {strides = array<i32>} : memref<72x256xf32, #tpu.memory_space<vmem>>, vector<8x256xf32>,
    %c16_i32_48 = arith.constant 16 : i32
    %101 = tpu.dynamic_rotate %94 by %c16_i32_48 dim 1 : vector<8x256xf32>, i32 -> vector<8x256xf32>
    %cst_49 = arith.constant 0.000000e+00 : f32
    %102 = vector.shape_cast %11 : vector<1x256xi1> to vector<1x256xi1>
    %103 = vector.broadcast %102 : vector<1x256xi1> to vector<8x256xi1>
    %104 = vector.broadcast %cst_49 : f32 to vector<8x256xf32>
    %105 = arith.select %103, %101, %104 : vector<8x256xi1>, vector<8x256xf32>
    %c8_50 = arith.constant 8 : index
    %c0_51 = arith.constant 0 : index
    %106 = vector.load %arg9[%c8_50, %c0_51] : memref<72x256xf32, #tpu.memory_space<vmem>>, vector<8x256xf32>
    tpu.vector_store %arg9[%c8_50, %c0_51], %105 {strides = array<i32>} : memref<72x256xf32, #tpu.memory_space<vmem>>, vector<8x256xf32>,
    %c15_i32_52 = arith.constant 15 : i32
    %107 = tpu.dynamic_rotate %94 by %c15_i32_52 dim 1 : vector<8x256xf32>, i32 -> vector<8x256xf32>
    %cst_53 = arith.constant 0.000000e+00 : f32
    %108 = vector.shape_cast %16 : vector<1x256xi1> to vector<1x256xi1>
    %109 = vector.broadcast %108 : vector<1x256xi1> to vector<8x256xi1>
    %110 = vector.broadcast %cst_53 : f32 to vector<8x256xf32>
    %111 = arith.select %109, %107, %110 : vector<8x256xi1>, vector<8x256xf32>
    %c16_54 = arith.constant 16 : index
    %c0_55 = arith.constant 0 : index
    %112 = vector.load %arg9[%c16_54, %c0_55] : memref<72x256xf32, #tpu.memory_space<vmem>>, vector<8x256xf32>
    tpu.vector_store %arg9[%c16_54, %c0_55], %111 {strides = array<i32>} : memref<72x256xf32, #tpu.memory_space<vmem>>, vector<8x256xf32>,
    %c1_i32_56 = arith.constant 1 : i32
    %113 = tpu.dynamic_rotate %94 by %c1_i32_56 dim 1 : vector<8x256xf32>, i32 -> vector<8x256xf32>
    %cst_57 = arith.constant 0.000000e+00 : f32
    %114 = vector.shape_cast %18 : vector<1x256xi1> to vector<1x256xi1>
    %115 = vector.broadcast %114 : vector<1x256xi1> to vector<8x256xi1>
    %116 = vector.broadcast %cst_57 : f32 to vector<8x256xf32>
    %117 = arith.select %115, %113, %116 : vector<8x256xi1>, vector<8x256xf32>
    %c24_58 = arith.constant 24 : index
    %c0_59 = arith.constant 0 : index
    %118 = vector.load %arg9[%c24_58, %c0_59] : memref<72x256xf32, #tpu.memory_space<vmem>>, vector<8x256xf32>
    tpu.vector_store %arg9[%c24_58, %c0_59], %117 {strides = array<i32>} : memref<72x256xf32, #tpu.memory_space<vmem>>, vector<8x256xf32>,
    %c32_60 = arith.constant 32 : index
    %c0_61 = arith.constant 0 : index
    %119 = vector.load %arg9[%c32_60, %c0_61] : memref<72x256xf32, #tpu.memory_space<vmem>>, vector<8x256xf32>
    tpu.vector_store %arg9[%c32_60, %c0_61], %94 {strides = array<i32>} : memref<72x256xf32, #tpu.memory_space<vmem>>, vector<8x256xf32>,
    %c255_i32_62 = arith.constant 255 : i32
    %120 = tpu.dynamic_rotate %94 by %c255_i32_62 dim 1 : vector<8x256xf32>, i32 -> vector<8x256xf32>
    %cst_63 = arith.constant 0.000000e+00 : f32
    %121 = vector.shape_cast %20 : vector<1x256xi1> to vector<1x256xi1>
    %122 = vector.broadcast %121 : vector<1x256xi1> to vector<8x256xi1>
    %123 = vector.broadcast %cst_63 : f32 to vector<8x256xf32>
    %124 = arith.select %122, %120, %123 : vector<8x256xi1>, vector<8x256xf32>
    %c40_64 = arith.constant 40 : index
    %c0_65 = arith.constant 0 : index
    %125 = vector.load %arg9[%c40_64, %c0_65] : memref<72x256xf32, #tpu.memory_space<vmem>>, vector<8x256xf32>
    tpu.vector_store %arg9[%c40_64, %c0_65], %124 {strides = array<i32>} : memref<72x256xf32, #tpu.memory_space<vmem>>, vector<8x256xf32>,
    %c241_i32_66 = arith.constant 241 : i32
    %126 = tpu.dynamic_rotate %94 by %c241_i32_66 dim 1 : vector<8x256xf32>, i32 -> vector<8x256xf32>
    %cst_67 = arith.constant 0.000000e+00 : f32
    %127 = vector.shape_cast %25 : vector<1x256xi1> to vector<1x256xi1>
    %128 = vector.broadcast %127 : vector<1x256xi1> to vector<8x256xi1>
    %129 = vector.broadcast %cst_67 : f32 to vector<8x256xf32>
    %130 = arith.select %128, %126, %129 : vector<8x256xi1>, vector<8x256xf32>
    %c48_68 = arith.constant 48 : index
    %c0_69 = arith.constant 0 : index
    %131 = vector.load %arg9[%c48_68, %c0_69] : memref<72x256xf32, #tpu.memory_space<vmem>>, vector<8x256xf32>
    tpu.vector_store %arg9[%c48_68, %c0_69], %130 {strides = array<i32>} : memref<72x256xf32, #tpu.memory_space<vmem>>, vector<8x256xf32>,
    %c240_i32_70 = arith.constant 240 : i32
    %132 = tpu.dynamic_rotate %94 by %c240_i32_70 dim 1 : vector<8x256xf32>, i32 -> vector<8x256xf32>
    %cst_71 = arith.constant 0.000000e+00 : f32
    %133 = vector.shape_cast %27 : vector<1x256xi1> to vector<1x256xi1>
    %134 = vector.broadcast %133 : vector<1x256xi1> to vector<8x256xi1>
    %135 = vector.broadcast %cst_71 : f32 to vector<8x256xf32>
    %136 = arith.select %134, %132, %135 : vector<8x256xi1>, vector<8x256xf32>
    %c56_72 = arith.constant 56 : index
    %c0_73 = arith.constant 0 : index
    %137 = vector.load %arg9[%c56_72, %c0_73] : memref<72x256xf32, #tpu.memory_space<vmem>>, vector<8x256xf32>
    tpu.vector_store %arg9[%c56_72, %c0_73], %136 {strides = array<i32>} : memref<72x256xf32, #tpu.memory_space<vmem>>, vector<8x256xf32>,
    %c239_i32_74 = arith.constant 239 : i32
    %138 = tpu.dynamic_rotate %94 by %c239_i32_74 dim 1 : vector<8x256xf32>, i32 -> vector<8x256xf32>
    %cst_75 = arith.constant 0.000000e+00 : f32
    %139 = vector.shape_cast %32 : vector<1x256xi1> to vector<1x256xi1>
    %140 = vector.broadcast %139 : vector<1x256xi1> to vector<8x256xi1>
    %141 = vector.broadcast %cst_75 : f32 to vector<8x256xf32>
    %142 = arith.select %140, %138, %141 : vector<8x256xi1>, vector<8x256xf32>
    %c64_76 = arith.constant 64 : index
    %c0_77 = arith.constant 0 : index
    %143 = vector.load %arg9[%c64_76, %c0_77] : memref<72x256xf32, #tpu.memory_space<vmem>>, vector<8x256xf32>
    tpu.vector_store %arg9[%c64_76, %c0_77], %142 {strides = array<i32>} : memref<72x256xf32, #tpu.memory_space<vmem>>, vector<8x256xf32>,
    %c0_78 = arith.constant 0 : index
    %c0_79 = arith.constant 0 : index
    %144 = vector.load %arg4[%c0_78, %c0_79] : memref<8x72xf32, #tpu.memory_space<vmem>>, vector<8x72xf32>
    %c0_80 = arith.constant 0 : index
    %c0_81 = arith.constant 0 : index
    %145 = vector.load %arg9[%c0_80, %c0_81] : memref<72x256xf32, #tpu.memory_space<vmem>>, vector<72x256xf32>
    %cst_82 = arith.constant dense<0.000000e+00> : vector<8x256xf32>
    %146 = tpu.matmul %144, %145, %cst_82 {dimension_numbers = #tpu.dot_dimension_numbers<[1], [0], [0], [1], [0, 0, 1, 1], [], []>} : vector<8x72xf32>, vector<72x256xf32>, vector<8x256xf32> -> vector<8x256xf32>
    %c0_83 = arith.constant 0 : index
    %c0_84 = arith.constant 0 : index
    %147 = vector.load %arg5[%c0_83, %c0_84] : memref<8x1xf32, #tpu.memory_space<vmem>>, vector<8x1xf32>
    %148 = vector.broadcast %147 : vector<8x1xf32> to vector<8x256xf32>
    %149 = arith.addf %146, %148 : vector<8x256xf32>
    %c0_85 = arith.constant 0 : index
    %c0_86 = arith.constant 0 : index
    %c0_87 = arith.constant 0 : index
    %150 = vector.load %arg7[%c0_85, %c0_86, %c0_87] : memref<1x8x256xf32, #tpu.memory_space<vmem>>, vector<1x8x256xf32>
    %151 = vector.shape_cast %150 : vector<1x8x256xf32> to vector<8x256xf32>
    %152 = vector.shape_cast %149 : vector<8x256xf32> to vector<1x8x256xf32>
    tpu.vector_store %arg7[%c0_85, %c0_86, %c0_87], %152 {strides = array<i32>} : memref<1x8x256xf32, #tpu.memory_space<vmem>>, vector<1x8x256xf32>,
    return
  }
  func.func @transform_0(%arg0: i32) -> (i32, i32, i32) {
    %c0_i32 = arith.constant 0 : i32
    %c0_i32_0 = arith.constant 0 : i32
    %c0_i32_1 = arith.constant 0 : i32
    return %arg0, %c0_i32, %c0_i32_0 : i32, i32, i32
  }
  func.func @transform_1(%arg0: i32) -> (i32, i32) {
    %c0_i32 = arith.constant 0 : i32
    %c0_i32_0 = arith.constant 0 : i32
    %c0_i32_1 = arith.constant 0 : i32
    return %c0_i32, %c0_i32_0 : i32, i32
  }
  func.func @transform_2(%arg0: i32) -> (i32, i32) {
    %c0_i32 = arith.constant 0 : i32
    %c0_i32_0 = arith.constant 0 : i32
    %c0_i32_1 = arith.constant 0 : i32
    return %c0_i32, %c0_i32_0 : i32, i32
  }
  func.func @transform_3(%arg0: i32) -> (i32, i32) {
    %c0_i32 = arith.constant 0 : i32
    %c0_i32_0 = arith.constant 0 : i32
    %c0_i32_1 = arith.constant 0 : i32
    return %c0_i32, %c0_i32_0 : i32, i32
  }
  func.func @transform_4(%arg0: i32) -> (i32, i32) {
    %c0_i32 = arith.constant 0 : i32
    %c0_i32_0 = arith.constant 0 : i32
    %c0_i32_1 = arith.constant 0 : i32
    return %c0_i32, %c0_i32_0 : i32, i32
  }
  func.func @transform_5(%arg0: i32) -> (i32, i32, i32) {
    %c0_i32 = arith.constant 0 : i32
    %c0_i32_0 = arith.constant 0 : i32
    %c0_i32_1 = arith.constant 0 : i32
    return %arg0, %c0_i32, %c0_i32_0 : i32, i32, i32
  }
  func.func @transform_6(%arg0: i32) -> (i32, i32, i32) {
    %c0_i32 = arith.constant 0 : i32
    %c0_i32_0 = arith.constant 0 : i32
    %c0_i32_1 = arith.constant 0 : i32
    return %arg0, %c0_i32, %c0_i32_0 : i32, i32, i32
  }
}

</mosaic_0001>

<llo_original>
// kernel: _model_forward.1
$region0: #{_model_forward.1}
  #allocation0 [shape = 'u32[]', space=smem, size = 0x4, offset = 0x4, fixed_abs, tag = 'smem constant byte address 0x4 - core index']
  #allocation1 [shape = 'u32[72,128]{1,0:T(1,128)}', space=vmem, size = 0x9000, scoped, tag = 'internal scratch']
  #allocation2 [shape = 'f32[72,256]{1,0:T(8,128)}', space=vmem, size = 0x12000, scoped, tag = 'scratch operand']
  #allocation3 [shape = 'f32[72,256]{1,0:T(8,128)}', space=vmem, size = 0x12000, scoped, tag = 'scratch operand']
  %s0 = inlined_call_operand.vmem [shape: f32[2,8,256], index: 0, kind: input, shape index: {}]
  %s1 = inlined_call_operand.vmem [shape: f32[8,72], index: 1, kind: input, shape index: {}]
  %s2 = inlined_call_operand.vmem [shape: f32[8,1], index: 2, kind: input, shape index: {}]
  %s3 = inlined_call_operand.vmem [shape: f32[8,72], index: 3, kind: input, shape index: {}]
  %s4 = inlined_call_operand.vmem [shape: f32[8,1], index: 4, kind: input, shape index: {}]
  %s5 = inlined_call_operand.vmem [shape: f32[2,8,256], index: 5, kind: output, shape index: {0}]
  %s6 = inlined_call_operand.vmem [shape: f32[2,8,256], index: 6, kind: output, shape index: {1}]
  %7 = xla_tuple %s5, %s6
  %s8 = sld [smem:[#allocation0]]
  $region61: #{_model_forward.1} parent=0
    _
  %s10 = ssub.s32 1, %s8
  %s11 = scalar_select 0, %s10, %s8
  loop: start=0, step=1, limit=4
  $region2: #{_model_forward.1} parent=0 // loop_pre_header
    _
  $region3: #{_model_forward.1} parent=0 // loop_header
    %s13 = sphi 0, %s17
    %p14 = scmp.ge.s32.totalorder %s13, 4
    %s23 = sphi 0, %s25
    %s26 = sphi 0, %s23
    %s27 = sphi 0, %s26
    %s43 = sphi 0, %s27
    %s47 = sphi 0, %s47
    %s49 = sphi 0, %s47
    %s50 = sphi 0, %s49
    %s64 = sphi 0, %s50
    %s68 = sphi 0, %s68
    %s70 = sphi 0, %s68
    %s71 = sphi 0, %s70
    %s85 = sphi 0, %s71
    %s89 = sphi 0, %s89
    %s91 = sphi 0, %s89
    %s92 = sphi 0, %s91
    %s106 = sphi 0, %s92
    %s110 = sphi 0, %s110
    %s112 = sphi 0, %s110
    %s113 = sphi 0, %s112
    %s127 = sphi 0, %s113
    %s133 = sphi 0, %s135
    %s136 = sphi 0, %s133
    %s137 = sphi 0, %s136
    %s153 = sphi 0, %s137
    %s159 = sphi 0, %s161
    %s162 = sphi 0, %s159
    %s163 = sphi 0, %s162
    %s179 = sphi 0, %s163
  $region4: #{_model_forward.1} parent=0 // loop_header_branch
    %16 = sbr.rel (%p14) target = $region8
  $region5: #{_model_forward.1} parent=0 // loop_body
    %s18 = ssub.s32 %s13, 1
    %s19 = ssub.s32 %s13, 2
    %s20 = sadd.s32 %s13, 1
    %s21 = ssub.s32 %s13, %s20
    %p22 = scmp.eq.s32.totalorder %s21, 0
    %s24 = sadd.s32 %s23, 1
    %s25 = scalar_select %p22, %s23, %s24
    %p28 = pneg %p22
    %p29 = scmp.eq.s32.totalorder %s13, 1
    %p30 = por %p28, %p29
    %p31 = scmp.ne.s32.totalorder %s23, %s26
    %p32 = scmp.eq.s32.totalorder %s13, 0
    %p33 = por %p31, %p32
    %p34 = scmp.ne.s32.totalorder %s23, %s26
    %p35 = scmp.eq.s32.totalorder %s18, 1
    %p36 = por %p34, %p35
    %p37 = scmp.ne.s32.totalorder %s26, %s27
    %p38 = scmp.eq.s32.totalorder %s18, 0
    %p39 = por %p37, %p38
    %p40 = scmp.ne.s32.totalorder %s26, %s27
    %p41 = scmp.eq.s32.totalorder %s19, 1
    %p42 = por %p40, %p41
    %p44 = scmp.ne.s32.totalorder %s27, %s43
    %p45 = scmp.eq.s32.totalorder %s19, 0
    %p46 = por %p44, %p45
    %s48 = sadd.s32 %s47, 1
    %p51 = scmp.eq.s32.totalorder %s13, 1
    %p52 = scmp.ne.s32.totalorder %s47, %s49
    %p53 = scmp.eq.s32.totalorder %s13, 0
    %p54 = por %p52, %p53
    %p55 = scmp.ne.s32.totalorder %s47, %s49
    %p56 = scmp.eq.s32.totalorder %s18, 1
    %p57 = por %p55, %p56
    %p58 = scmp.ne.s32.totalorder %s49, %s50
    %p59 = scmp.eq.s32.totalorder %s18, 0
    %p60 = por %p58, %p59
    %p61 = scmp.ne.s32.totalorder %s49, %s50
    %p62 = scmp.eq.s32.totalorder %s19, 1
    %p63 = por %p61, %p62
    %p65 = scmp.ne.s32.totalorder %s50, %s64
    %p66 = scmp.eq.s32.totalorder %s19, 0
    %p67 = por %p65, %p66
    %s69 = sadd.s32 %s68, 1
    %p72 = scmp.eq.s32.totalorder %s13, 1
    %p73 = scmp.ne.s32.totalorder %s68, %s70
    %p74 = scmp.eq.s32.totalorder %s13, 0
    %p75 = por %p73, %p74
    %p76 = scmp.ne.s32.totalorder %s68, %s70
    %p77 = scmp.eq.s32.totalorder %s18, 1
    %p78 = por %p76, %p77
    %p79 = scmp.ne.s32.totalorder %s70, %s71
    %p80 = scmp.eq.s32.totalorder %s18, 0
    %p81 = por %p79, %p80
    %p82 = scmp.ne.s32.totalorder %s70, %s71
    %p83 = scmp.eq.s32.totalorder %s19, 1
    %p84 = por %p82, %p83
    %p86 = scmp.ne.s32.totalorder %s71, %s85
    %p87 = scmp.eq.s32.totalorder %s19, 0
    %p88 = por %p86, %p87
    %s90 = sadd.s32 %s89, 1
    %p93 = scmp.eq.s32.totalorder %s13, 1
    %p94 = scmp.ne.s32.totalorder %s89, %s91
    %p95 = scmp.eq.s32.totalorder %s13, 0
    %p96 = por %p94, %p95
    %p97 = scmp.ne.s32.totalorder %s89, %s91
    %p98 = scmp.eq.s32.totalorder %s18, 1
    %p99 = por %p97, %p98
    %p100 = scmp.ne.s32.totalorder %s91, %s92
    %p101 = scmp.eq.s32.totalorder %s18, 0
    %p102 = por %p100, %p101
    %p103 = scmp.ne.s32.totalorder %s91, %s92
    %p104 = scmp.eq.s32.totalorder %s19, 1
    %p105 = por %p103, %p104
    %p107 = scmp.ne.s32.totalorder %s92, %s106
    %p108 = scmp.eq.s32.totalorder %s19, 0
    %p109 = por %p107, %p108
    %s111 = sadd.s32 %s110, 1
    %p114 = scmp.eq.s32.totalorder %s13, 1
    %p115 = scmp.ne.s32.totalorder %s110, %s112
    %p116 = scmp.eq.s32.totalorder %s13, 0
    %p117 = por %p115, %p116
    %p118 = scmp.ne.s32.totalorder %s110, %s112
    %p119 = scmp.eq.s32.totalorder %s18, 1
    %p120 = por %p118, %p119
    %p121 = scmp.ne.s32.totalorder %s112, %s113
    %p122 = scmp.eq.s32.totalorder %s18, 0
    %p123 = por %p121, %p122
    %p124 = scmp.ne.s32.totalorder %s112, %s113
    %p125 = scmp.eq.s32.totalorder %s19, 1
    %p126 = por %p124, %p125
    %p128 = scmp.ne.s32.totalorder %s113, %s127
    %p129 = scmp.eq.s32.totalorder %s19, 0
    %p130 = por %p128, %p129
    %s131 = ssub.s32 %s13, %s20
    %p132 = scmp.eq.s32.totalorder %s131, 0
    %s134 = sadd.s32 %s133, 1
    %s135 = scalar_select %p132, %s133, %s134
    %p138 = pneg %p132
    %p139 = scmp.eq.s32.totalorder %s13, 1
    %p140 = por %p138, %p139
    %p141 = scmp.ne.s32.totalorder %s133, %s136
    %p142 = scmp.eq.s32.totalorder %s13, 0
    %p143 = por %p141, %p142
    %p144 = scmp.ne.s32.totalorder %s133, %s136
    %p145 = scmp.eq.s32.totalorder %s18, 1
    %p146 = por %p144, %p145
    %p147 = scmp.ne.s32.totalorder %s136, %s137
    %p148 = scmp.eq.s32.totalorder %s18, 0
    %p149 = por %p147, %p148
    %p150 = scmp.ne.s32.totalorder %s136, %s137
    %p151 = scmp.eq.s32.totalorder %s19, 1
    %p152 = por %p150, %p151
    %p154 = scmp.ne.s32.totalorder %s137, %s153
    %p155 = scmp.eq.s32.totalorder %s19, 0
    %p156 = por %p154, %p155
    %s157 = ssub.s32 %s13, %s20
    %p158 = scmp.eq.s32.totalorder %s157, 0
    %s160 = sadd.s32 %s159, 1
    %s161 = scalar_select %p158, %s159, %s160
    %p164 = pneg %p158
    %p165 = scmp.eq.s32.totalorder %s13, 1
    %p166 = por %p164, %p165
    %p167 = scmp.ne.s32.totalorder %s159, %s162
    %p168 = scmp.eq.s32.totalorder %s13, 0
    %p169 = por %p167, %p168
    %p170 = scmp.ne.s32.totalorder %s159, %s162
    %p171 = scmp.eq.s32.totalorder %s18, 1
    %p172 = por %p170, %p171
    %p173 = scmp.ne.s32.totalorder %s162, %s163
    %p174 = scmp.eq.s32.totalorder %s18, 0
    %p175 = por %p173, %p174
    %p176 = scmp.ne.s32.totalorder %s162, %s163
    %p177 = scmp.eq.s32.totalorder %s19, 1
    %p178 = por %p176, %p177
    %p180 = scmp.ne.s32.totalorder %s163, %s179
    %p181 = scmp.eq.s32.totalorder %s19, 0
    %p182 = por %p180, %p181
    %p183 = scmp.le.s32.totalorder 1, %s13
    %p184 = scmp.lt.s32.totalorder %s13, 3
    %p185 = pnand %p183, %p184
    %p186 = pneg %p185
    // Predicated region
    $region9: #{_model_forward.1} parent=5 // pred_check
      _
    $region10: #{_model_forward.1} parent=5 // pred_check_branch
      %188 = sbr.rel (%p185) target = $region12
    $region11: #{_model_forward.1} parent=5 // pred_region
      %s189 = ssub.s32 %s13, 1
      // Predicated region
      $region13: #{_model_forward.1} parent=11 // pred_check
        %p190 = pneg %p60
      $region14: #{_model_forward.1} parent=11 // pred_check_branch
        %192 = sbr.rel (%p190) target = $region16
      $region15: #{_model_forward.1} parent=11 // pred_region
        _
      $region16: #{_model_forward.1} parent=11 // pred_fallthru
        _
      // Predicated region
      $region17: #{_model_forward.1} parent=11 // pred_check
        %p193 = pneg %p81
      $region18: #{_model_forward.1} parent=11 // pred_check_branch
        %195 = sbr.rel (%p193) target = $region20
      $region19: #{_model_forward.1} parent=11 // pred_region
        _
      $region20: #{_model_forward.1} parent=11 // pred_fallthru
        _
      // Predicated region
      $region21: #{_model_forward.1} parent=11 // pred_check
        %p196 = pneg %p102
      $region22: #{_model_forward.1} parent=11 // pred_check_branch
        %198 = sbr.rel (%p196) target = $region24
      $region23: #{_model_forward.1} parent=11 // pred_region
        _
      $region24: #{_model_forward.1} parent=11 // pred_fallthru
        _
      // Predicated region
      $region25: #{_model_forward.1} parent=11 // pred_check
        %p199 = pneg %p123
      $region26: #{_model_forward.1} parent=11 // pred_check_branch
        %201 = sbr.rel (%p199) target = $region28
      $region27: #{_model_forward.1} parent=11 // pred_region
        _
      $region28: #{_model_forward.1} parent=11 // pred_fallthru
        _
    $region12: #{_model_forward.1} parent=5 // pred_fallthru
      _
    %p202 = scmp.lt.s32.totalorder %s13, 2
    // Predicated region
    $region29: #{_model_forward.1} parent=5 // pred_check
      %p203 = pneg %p202
    $region30: #{_model_forward.1} parent=5 // pred_check_branch
      %205 = sbr.rel (%p203) target = $region32
    $region31: #{_model_forward.1} parent=5 // pred_region
      // Predicated region
      $region33: #{_model_forward.1} parent=31 // pred_check
        %p206 = pneg %p33
      $region34: #{_model_forward.1} parent=31 // pred_check_branch
        %208 = sbr.rel (%p206) target = $region36
      $region35: #{_model_forward.1} parent=31 // pred_region
        %p209 = scmp.lt.s32.totalorder %s13, 1
        %s210 = scalar_select %p209, %s13, 1
        %s211 = smul.addr %s210, 2
        %s212 = smul.addr %s211, 8
        %s213 = scalar_lea.vmem %s0, %s212
      $region36: #{_model_forward.1} parent=31 // pred_fallthru
        _
    $region32: #{_model_forward.1} parent=5 // pred_fallthru
      _
    %p214 = scmp.le.s32.totalorder 1, %s13
    %p215 = scmp.lt.s32.totalorder %s13, 3
    %p216 = pnand %p214, %p215
    %p217 = pneg %p216
    // Predicated region
    $region37: #{_model_forward.1} parent=5 // pred_check
      _
    $region38: #{_model_forward.1} parent=5 // pred_check_branch
      %219 = sbr.rel (%p216) target = $region40
    $region39: #{_model_forward.1} parent=5 // pred_region
      %s220 = ssub.s32 %s13, 1
      %p221 = scmp.lt.s32.totalorder %s18, 1
      %s222 = scalar_select %p221, %s18, 1
      %s223 = smul.addr %s222, 2
      %s224 = smul.addr %s223, 8
      %s225 = scalar_lea.vmem %s0, %s224
      %p226 = pneg %p39
      %p227 = pneg %p36
      %p228 = pneg %p60
      %p229 = pneg %p57
      %p230 = pneg %p81
      %p231 = pneg %p78
      %p232 = pneg %p102
      %p233 = pneg %p99
      %p234 = pneg %p123
      %p235 = pneg %p120
      %p236 = pneg %p149
      %p237 = pneg %p146
      %p238 = scmp.lt.s32.totalorder %s18, 1
      %s239 = scalar_select %p238, %s18, 1
      %s240 = smul.addr %s239, 2
      %s241 = smul.addr %s240, 8
      %s242 = scalar_lea.vmem %s5, %s241
      %p243 = pneg %p175
      %p244 = pneg %p172
      %p245 = scmp.lt.s32.totalorder %s18, 1
      %s246 = scalar_select %p245, %s18, 1
      %s247 = smul.addr %s246, 2
      %s248 = smul.addr %s247, 8
      %s249 = scalar_lea.vmem %s6, %s248
      %p250 = scmp.lt.s32.totalorder %s18, 1
      %s251 = scalar_select %p250, %s18, 1
      %s252 = smul.addr %s251, 2
      %s253 = smul.addr %s252, 8
      %s254 = scalar_lea.vmem %s0, %s253
      %p255 = scmp.lt.s32.totalorder %s18, 1
      %s256 = scalar_select %p255, %s18, 1
      %s257 = smul.addr %s256, 2
      %s258 = smul.addr %s257, 8
      %s259 = scalar_lea.vmem %s5, %s258
      %p260 = scmp.lt.s32.totalorder %s18, 1
      %s261 = scalar_select %p260, %s18, 1
      %s262 = smul.addr %s261, 2
      %s263 = smul.addr %s262, 8
      %s264 = scalar_lea.vmem %s6, %s263
      %v265 = vlaneseq
      %v266 = vand.u32 %v265, 127
      %v267 = vadd.s32 %v266, 128
      %v268 = vand.u32 %v266, 255
      %v269 = vand.u32 %v267, 255
      %v270 = vand.u32 %v266, 15
      %v271 = vand.u32 %v267, 15
      %vm272 = vcmp.ge.s32.totalorder %v268, 16
      %vm273 = vcmp.ge.s32.totalorder %v269, 16
      %vm274 = vcmp.ge.s32.totalorder %v270, 1
      %vm275 = vcmp.ge.s32.totalorder %v271, 1
      %vm276 = vmand %vm272, %vm274
      %vm277 = vmand %vm273, %vm275
      %vm278 = vcmp.lt.s32.totalorder %v270, 15
      %vm279 = vcmp.lt.s32.totalorder %v271, 15
      %vm280 = vmand %vm272, %vm278
      %vm281 = vmand %vm273, %vm279
      %vm282 = vcmp.lt.s32.totalorder %v268, 240
      %vm283 = vcmp.lt.s32.totalorder %v269, 240
      %vm284 = vmand %vm282, %vm274
      %vm285 = vmand %vm283, %vm275
      %vm286 = vmand %vm282, %vm278
      %vm287 = vmand %vm283, %vm279
      %v288 = vld [vmem:[%s254] sm:$0xff]
      %v289 = vld [vmem:[%s254 + $0x8] sm:$0xff]
      %290 = vrot.lane.b32.xlu0 %v288, 17
      %v291 = vpop.permute.xlu0 %290
      %292 = vrot.lane.b32.xlu0 %v289, 17
      %v293 = vpop.permute.xlu0 %292
      %vm294 = vcmp.lt.s32.totalorder %v266, 17
      %v295 = vsel %vm294, %v291, %v293
      %v296 = vsel %vm294, %v293, %v291
      %v297 = vsel %vm276, 1, 0
      %v298 = vsel %vm277, 1, 0
      %vm299 = vcmp.eq.s32.totalorder %v297, 1
      %vm300 = vcmp.eq.s32.totalorder %v298, 1
      %v301 = vsel %vm299, %v296, 0.0
      %v302 = vsel %vm300, %v295, 0.0
      %303 = vst [vmem:[#allocation2] sm:$0xff] %v301
      %304 = vst [vmem:[#allocation2 + $0x8] sm:$0xff] %v302
      %305 = vrot.lane.b32.xlu0 %v288, 16
      %v306 = vpop.permute.xlu0 %305
      %307 = vrot.lane.b32.xlu0 %v289, 16
      %v308 = vpop.permute.xlu0 %307
      %vm309 = vcmp.lt.s32.totalorder %v266, 16
      %v310 = vsel %vm309, %v306, %v308
      %v311 = vsel %vm309, %v308, %v306
      %v312 = vsel %vm272, 1, 0
      %v313 = vsel %vm273, 1, 0
      %vm314 = vcmp.eq.s32.totalorder %v312, 1
      %vm315 = vcmp.eq.s32.totalorder %v313, 1
      %v316 = vsel %vm314, %v311, 0.0
      %v317 = vsel %vm315, %v310, 0.0
      %318 = vst [vmem:[#allocation2 + $0x10] sm:$0xff] %v316
      %319 = vst [vmem:[#allocation2 + $0x18] sm:$0xff] %v317
      %320 = vrot.lane.b32.xlu0 %v288, 15
      %v321 = vpop.permute.xlu0 %320
      %322 = vrot.lane.b32.xlu0 %v289, 15
      %v323 = vpop.permute.xlu0 %322
      %vm324 = vcmp.lt.s32.totalorder %v266, 15
      %v325 = vsel %vm324, %v321, %v323
      %v326 = vsel %vm324, %v323, %v321
      %v327 = vsel %vm280, 1, 0
      %v328 = vsel %vm281, 1, 0
      %vm329 = vcmp.eq.s32.totalorder %v327, 1
      %vm330 = vcmp.eq.s32.totalorder %v328, 1
      %v331 = vsel %vm329, %v326, 0.0
      %v332 = vsel %vm330, %v325, 0.0
      %333 = vst [vmem:[#allocation2 + $0x20] sm:$0xff] %v331
      %334 = vst [vmem:[#allocation2 + $0x28] sm:$0xff] %v332
      %335 = vrot.lane.b32.xlu0 %v288, 1
      %v336 = vpop.permute.xlu0 %335
      %337 = vrot.lane.b32.xlu0 %v289, 1
      %v338 = vpop.permute.xlu0 %337
      %vm339 = vcmp.lt.s32.totalorder %v266, 1
      %v340 = vsel %vm339, %v336, %v338
      %v341 = vsel %vm339, %v338, %v336
      %v342 = vsel %vm274, 1, 0
      %v343 = vsel %vm275, 1, 0
      %vm344 = vcmp.eq.s32.totalorder %v342, 1
      %vm345 = vcmp.eq.s32.totalorder %v343, 1
      %v346 = vsel %vm344, %v341, 0.0
      %v347 = vsel %vm345, %v340, 0.0
      %348 = vst [vmem:[#allocation2 + $0x30] sm:$0xff] %v346
      %349 = vst [vmem:[#allocation2 + $0x38] sm:$0xff] %v347
      %350 = vst [vmem:[#allocation2 + $0x40] sm:$0xff] %v288
      %351 = vst [vmem:[#allocation2 + $0x48] sm:$0xff] %v289
      %352 = vrot.lane.b32.xlu0 %v288, 127
      %v353 = vpop.permute.xlu0 %352
      %354 = vrot.lane.b32.xlu0 %v289, 127
      %v355 = vpop.permute.xlu0 %354
      %vm356 = vcmp.lt.s32.totalorder %v266, 127
      %v357 = vsel %vm356, %v353, %v355
      %v358 = vsel %vm356, %v355, %v353
      %v359 = vsel %vm278, 1, 0
      %v360 = vsel %vm279, 1, 0
      %vm361 = vcmp.eq.s32.totalorder %v359, 1
      %vm362 = vcmp.eq.s32.totalorder %v360, 1
      %v363 = vsel %vm361, %v357, 0.0
      %v364 = vsel %vm362, %v358, 0.0
      %365 = vst [vmem:[#allocation2 + $0x50] sm:$0xff] %v363
      %366 = vst [vmem:[#allocation2 + $0x58] sm:$0xff] %v364
      %367 = vrot.lane.b32.xlu0 %v288, 113
      %v368 = vpop.permute.xlu0 %367
      %369 = vrot.lane.b32.xlu0 %v289, 113
      %v370 = vpop.permute.xlu0 %369
      %vm371 = vcmp.lt.s32.totalorder %v266, 113
      %v372 = vsel %vm371, %v368, %v370
      %v373 = vsel %vm371, %v370, %v368
      %v374 = vsel %vm284, 1, 0
      %v375 = vsel %vm285, 1, 0
      %vm376 = vcmp.eq.s32.totalorder %v374, 1
      %vm377 = vcmp.eq.s32.totalorder %v375, 1
      %v378 = vsel %vm376, %v372, 0.0
      %v379 = vsel %vm377, %v373, 0.0
      %380 = vst [vmem:[#allocation2 + $0x60] sm:$0xff] %v378
      %381 = vst [vmem:[#allocation2 + $0x68] sm:$0xff] %v379
      %382 = vrot.lane.b32.xlu0 %v288, 112
      %v383 = vpop.permute.xlu0 %382
      %384 = vrot.lane.b32.xlu0 %v289, 112
      %v385 = vpop.permute.xlu0 %384
      %vm386 = vcmp.lt.s32.totalorder %v266, 112
      %v387 = vsel %vm386, %v383, %v385
      %v388 = vsel %vm386, %v385, %v383
      %v389 = vsel %vm282, 1, 0
      %v390 = vsel %vm283, 1, 0
      %vm391 = vcmp.eq.s32.totalorder %v389, 1
      %vm392 = vcmp.eq.s32.totalorder %v390, 1
      %v393 = vsel %vm391, %v387, 0.0
      %v394 = vsel %vm392, %v388, 0.0
      %395 = vst [vmem:[#allocation2 + $0x70] sm:$0xff] %v393
      %396 = vst [vmem:[#allocation2 + $0x78] sm:$0xff] %v394
      %397 = vrot.lane.b32.xlu0 %v288, 111
      %v398 = vpop.permute.xlu0 %397
      %399 = vrot.lane.b32.xlu0 %v289, 111
      %v400 = vpop.permute.xlu0 %399
      %vm401 = vcmp.lt.s32.totalorder %v266, 111
      %v402 = vsel %vm401, %v398, %v400
      %v403 = vsel %vm401, %v400, %v398
      %v404 = vsel %vm286, 1, 0
      %v405 = vsel %vm287, 1, 0
      %vm406 = vcmp.eq.s32.totalorder %v404, 1
      %vm407 = vcmp.eq.s32.totalorder %v405, 1
      %v408 = vsel %vm406, %v402, 0.0
      %v409 = vsel %vm407, %v403, 0.0
      %410 = vst [vmem:[#allocation2 + $0x80] sm:$0xff] %v408
      %411 = vst [vmem:[#allocation2 + $0x88] sm:$0xff] %v409
      %v412 = vld [vmem:[%s1] sm:$0xff]
      %v413 = vld [vmem:[#allocation2] sm:$0xff]
      %v414 = vld [vmem:[#allocation2 + $0x8] sm:$0xff]
      %v415 = vld [vmem:[#allocation2 + $0x10] sm:$0xff]
      %v416 = vld [vmem:[#allocation2 + $0x18] sm:$0xff]
      %v417 = vld [vmem:[#allocation2 + $0x20] sm:$0xff]
      %v418 = vld [vmem:[#allocation2 + $0x28] sm:$0xff]
      %v419 = vld [vmem:[#allocation2 + $0x30] sm:$0xff]
      %v420 = vld [vmem:[#allocation2 + $0x38] sm:$0xff]
      %v421 = vld [vmem:[#allocation2 + $0x40] sm:$0xff]
      %v422 = vld [vmem:[#allocation2 + $0x48] sm:$0xff]
      %v423 = vld [vmem:[#allocation2 + $0x50] sm:$0xff]
      %v424 = vld [vmem:[#allocation2 + $0x58] sm:$0xff]
      %v425 = vld [vmem:[#allocation2 + $0x60] sm:$0xff]
      %v426 = vld [vmem:[#allocation2 + $0x68] sm:$0xff]
      %v427 = vld [vmem:[#allocation2 + $0x70] sm:$0xff]
      %v428 = vld [vmem:[#allocation2 + $0x78] sm:$0xff]
      %v429 = vld [vmem:[#allocation2 + $0x80] sm:$0xff]
      %v430 = vld [vmem:[#allocation2 + $0x88] sm:$0xff]
      %v431 = vld [vmem:[%s2] sm:$0xff]
      %433 = vset.pattern.permute.xlu0 0
      %434 = vperm.xlu0 %433, %v431
      %v435 = vpop.permute.xlu0 %434
      %vm437 = vcmask 588800
      %v439 = vsel %vm437, %v412, 0
      %441 = vmatpush.msra.mxu0 0.0
      %442 = vmatpush.msra.mxu0 0.0
      %443 = vmatpush.msra.mxu0 0.0
      %444 = vmatpush.msra.mxu0 0.0
      %445 = vmatpush.msra.mxu0 0.0
      %446 = vmatpush.msra.mxu0 0.0
      %447 = vmatpush.msra.mxu0 0.0
      %448 = vmatpush.msra.mxu0 %v429
      %449 = vmatpush.msra.mxu0 %v427
      %450 = vmatpush.msra.mxu0 %v425
      %451 = vmatpush.msra.mxu0 %v423
      %452 = vmatpush.msra.mxu0 %v421
      %453 = vmatpush.msra.mxu0 %v419
      %454 = vmatpush.msra.mxu0 %v417
      %455 = vmatpush.msra.mxu0 %v415
      %456 = vmatpush.msra.mxu0 %v413
      %457 = vmatmul.f32.gmra.mxu0 %v439
      %v458 = vpop.f32.mrf.mxu0
      %v459 = vadd.f32 %v435, %v458
      %460 = vdwg.mxu0
      %461 = vmatpush.msra.mxu0 0.0
      %462 = vmatpush.msra.mxu0 0.0
      %463 = vmatpush.msra.mxu0 0.0
      %464 = vmatpush.msra.mxu0 0.0
      %465 = vmatpush.msra.mxu0 0.0
      %466 = vmatpush.msra.mxu0 0.0
      %467 = vmatpush.msra.mxu0 0.0
      %468 = vmatpush.msra.mxu0 %v430
      %469 = vmatpush.msra.mxu0 %v428
      %470 = vmatpush.msra.mxu0 %v426
      %471 = vmatpush.msra.mxu0 %v424
      %472 = vmatpush.msra.mxu0 %v422
      %473 = vmatpush.msra.mxu0 %v420
      %474 = vmatpush.msra.mxu0 %v418
      %475 = vmatpush.msra.mxu0 %v416
      %476 = vmatpush.msra.mxu0 %v414
      %477 = vmatmul.f32.gmra.mxu0 %v439
      %v478 = vpop.f32.mrf.mxu0
      %v479 = vadd.f32 %v435, %v478
      %480 = vdwg.mxu0
      %481 = vst [vmem:[%s259] sm:$0xff] %v459
      %482 = vst [vmem:[%s259 + $0x8] sm:$0xff] %v479
      %v483 = vmax.f32 %v459, 0.0
      %v484 = vmax.f32 %v479, 0.0
      %485 = vrot.lane.b32.xlu0 %v483, 17
      %v486 = vpop.permute.xlu0 %485
      %487 = vrot.lane.b32.xlu0 %v484, 17
      %v488 = vpop.permute.xlu0 %487
      %v489 = vsel %vm294, %v486, %v488
      %v490 = vsel %vm294, %v488, %v486
      %v491 = vsel %vm299, %v490, 0.0
      %v492 = vsel %vm300, %v489, 0.0
      %493 = vst [vmem:[#allocation3] sm:$0xff] %v491
      %494 = vst [vmem:[#allocation3 + $0x8] sm:$0xff] %v492
      %495 = vrot.lane.b32.xlu0 %v483, 16
      %v496 = vpop.permute.xlu0 %495
      %497 = vrot.lane.b32.xlu0 %v484, 16
      %v498 = vpop.permute.xlu0 %497
      %v499 = vsel %vm309, %v496, %v498
      %v500 = vsel %vm309, %v498, %v496
      %v501 = vsel %vm314, %v500, 0.0
      %v502 = vsel %vm315, %v499, 0.0
      %503 = vst [vmem:[#allocation3 + $0x10] sm:$0xff] %v501
      %504 = vst [vmem:[#allocation3 + $0x18] sm:$0xff] %v502
      %505 = vrot.lane.b32.xlu0 %v483, 15
      %v506 = vpop.permute.xlu0 %505
      %507 = vrot.lane.b32.xlu0 %v484, 15
      %v508 = vpop.permute.xlu0 %507
      %v509 = vsel %vm324, %v506, %v508
      %v510 = vsel %vm324, %v508, %v506
      %v511 = vsel %vm329, %v510, 0.0
      %v512 = vsel %vm330, %v509, 0.0
      %513 = vst [vmem:[#allocation3 + $0x20] sm:$0xff] %v511
      %514 = vst [vmem:[#allocation3 + $0x28] sm:$0xff] %v512
      %515 = vrot.lane.b32.xlu0 %v483, 1
      %v516 = vpop.permute.xlu0 %515
      %517 = vrot.lane.b32.xlu0 %v484, 1
      %v518 = vpop.permute.xlu0 %517
      %v519 = vsel %vm339, %v516, %v518
      %v520 = vsel %vm339, %v518, %v516
      %v521 = vsel %vm344, %v520, 0.0
      %v522 = vsel %vm345, %v519, 0.0
      %523 = vst [vmem:[#allocation3 + $0x30] sm:$0xff] %v521
      %524 = vst [vmem:[#allocation3 + $0x38] sm:$0xff] %v522
      %525 = vst [vmem:[#allocation3 + $0x40] sm:$0xff] %v483
      %526 = vst [vmem:[#allocation3 + $0x48] sm:$0xff] %v484
      %527 = vrot.lane.b32.xlu0 %v483, 127
      %v528 = vpop.permute.xlu0 %527
      %529 = vrot.lane.b32.xlu0 %v484, 127
      %v530 = vpop.permute.xlu0 %529
      %v531 = vsel %vm356, %v528, %v530
      %v532 = vsel %vm356, %v530, %v528
      %v533 = vsel %vm361, %v531, 0.0
      %v534 = vsel %vm362, %v532, 0.0
      %535 = vst [vmem:[#allocation3 + $0x50] sm:$0xff] %v533
      %536 = vst [vmem:[#allocation3 + $0x58] sm:$0xff] %v534
      %537 = vrot.lane.b32.xlu0 %v483, 113
      %v538 = vpop.permute.xlu0 %537
      %539 = vrot.lane.b32.xlu0 %v484, 113
      %v540 = vpop.permute.xlu0 %539
      %v541 = vsel %vm371, %v538, %v540
      %v542 = vsel %vm371, %v540, %v538
      %v543 = vsel %vm376, %v541, 0.0
      %v544 = vsel %vm377, %v542, 0.0
      %545 = vst [vmem:[#allocation3 + $0x60] sm:$0xff] %v543
      %546 = vst [vmem:[#allocation3 + $0x68] sm:$0xff] %v544
      %547 = vrot.lane.b32.xlu0 %v483, 112
      %v548 = vpop.permute.xlu0 %547
      %549 = vrot.lane.b32.xlu0 %v484, 112
      %v550 = vpop.permute.xlu0 %549
      %v551 = vsel %vm386, %v548, %v550
      %v552 = vsel %vm386, %v550, %v548
      %v553 = vsel %vm391, %v551, 0.0
      %v554 = vsel %vm392, %v552, 0.0
      %555 = vst [vmem:[#allocation3 + $0x70] sm:$0xff] %v553
      %556 = vst [vmem:[#allocation3 + $0x78] sm:$0xff] %v554
      %557 = vrot.lane.b32.xlu0 %v483, 111
      %v558 = vpop.permute.xlu0 %557
      %559 = vrot.lane.b32.xlu0 %v484, 111
      %v560 = vpop.permute.xlu0 %559
      %v561 = vsel %vm401, %v558, %v560
      %v562 = vsel %vm401, %v560, %v558
      %v563 = vsel %vm406, %v561, 0.0
      %v564 = vsel %vm407, %v562, 0.0
      %565 = vst [vmem:[#allocation3 + $0x80] sm:$0xff] %v563
      %566 = vst [vmem:[#allocation3 + $0x88] sm:$0xff] %v564
      %v567 = vld [vmem:[%s3] sm:$0xff]
      %v568 = vld [vmem:[#allocation3] sm:$0xff]
      %v569 = vld [vmem:[#allocation3 + $0x8] sm:$0xff]
      %v570 = vld [vmem:[#allocation3 + $0x10] sm:$0xff]
      %v571 = vld [vmem:[#allocation3 + $0x18] sm:$0xff]
      %v572 = vld [vmem:[#allocation3 + $0x20] sm:$0xff]
      %v573 = vld [vmem:[#allocation3 + $0x28] sm:$0xff]
      %v574 = vld [vmem:[#allocation3 + $0x30] sm:$0xff]
      %v575 = vld [vmem:[#allocation3 + $0x38] sm:$0xff]
      %v576 = vld [vmem:[#allocation3 + $0x40] sm:$0xff]
      %v577 = vld [vmem:[#allocation3 + $0x48] sm:$0xff]
      %v578 = vld [vmem:[#allocation3 + $0x50] sm:$0xff]
      %v579 = vld [vmem:[#allocation3 + $0x58] sm:$0xff]
      %v580 = vld [vmem:[#allocation3 + $0x60] sm:$0xff]
      %v581 = vld [vmem:[#allocation3 + $0x68] sm:$0xff]
      %v582 = vld [vmem:[#allocation3 + $0x70] sm:$0xff]
      %v583 = vld [vmem:[#allocation3 + $0x78] sm:$0xff]
      %v584 = vld [vmem:[#allocation3 + $0x80] sm:$0xff]
      %v585 = vld [vmem:[#allocation3 + $0x88] sm:$0xff]
      %v586 = vld [vmem:[%s4] sm:$0xff]
      %588 = vset.pattern.permute.xlu0 0
      %589 = vperm.xlu0 %588, %v586
      %v590 = vpop.permute.xlu0 %589
      %v593 = vsel %vm437, %v567, 0
      %595 = vmatpush.msra.mxu0 0.0
      %596 = vmatpush.msra.mxu0 0.0
      %597 = vmatpush.msra.mxu0 0.0
      %598 = vmatpush.msra.mxu0 0.0
      %599 = vmatpush.msra.mxu0 0.0
      %600 = vmatpush.msra.mxu0 0.0
      %601 = vmatpush.msra.mxu0 0.0
      %602 = vmatpush.msra.mxu0 %v584
      %603 = vmatpush.msra.mxu0 %v582
      %604 = vmatpush.msra.mxu0 %v580
      %605 = vmatpush.msra.mxu0 %v578
      %606 = vmatpush.msra.mxu0 %v576
      %607 = vmatpush.msra.mxu0 %v574
      %608 = vmatpush.msra.mxu0 %v572
      %609 = vmatpush.msra.mxu0 %v570
      %610 = vmatpush.msra.mxu0 %v568
      %611 = vmatmul.f32.gmra.mxu0 %v593
      %v612 = vpop.f32.mrf.mxu0
      %v613 = vadd.f32 %v590, %v612
      %614 = vdwg.mxu0
      %615 = vmatpush.msra.mxu0 0.0
      %616 = vmatpush.msra.mxu0 0.0
      %617 = vmatpush.msra.mxu0 0.0
      %618 = vmatpush.msra.mxu0 0.0
      %619 = vmatpush.msra.mxu0 0.0
      %620 = vmatpush.msra.mxu0 0.0
      %621 = vmatpush.msra.mxu0 0.0
      %622 = vmatpush.msra.mxu0 %v585
      %623 = vmatpush.msra.mxu0 %v583
      %624 = vmatpush.msra.mxu0 %v581
      %625 = vmatpush.msra.mxu0 %v579
      %626 = vmatpush.msra.mxu0 %v577
      %627 = vmatpush.msra.mxu0 %v575
      %628 = vmatpush.msra.mxu0 %v573
      %629 = vmatpush.msra.mxu0 %v571
      %630 = vmatpush.msra.mxu0 %v569
      %631 = vmatmul.f32.gmra.mxu0 %v593
      %v632 = vpop.f32.mrf.mxu0
      %v633 = vadd.f32 %v590, %v632
      %634 = vdwg.mxu0
      %635 = vst [vmem:[%s264] sm:$0xff] %v613
      %636 = vst [vmem:[%s264 + $0x8] sm:$0xff] %v633
      %p637 = scmp.lt.s32.totalorder %s18, 1
      %s638 = scalar_select %p637, %s18, 1
      %s639 = smul.addr %s638, 2
      %s640 = smul.addr %s639, 8
      %s641 = scalar_lea.vmem %s5, %s640
      %p642 = scmp.lt.s32.totalorder %s18, 1
      %s643 = scalar_select %p642, %s18, 1
      %s644 = smul.addr %s643, 2
      %s645 = smul.addr %s644, 8
      %s646 = scalar_lea.vmem %s6, %s645
      // Predicated region
      $region41: #{_model_forward.1} parent=39 // pred_check
        %p647 = pneg %p146
      $region42: #{_model_forward.1} parent=39 // pred_check_branch
        %649 = sbr.rel (%p647) target = $region44
      $region43: #{_model_forward.1} parent=39 // pred_region
        _
      $region44: #{_model_forward.1} parent=39 // pred_fallthru
        _
      // Predicated region
      $region45: #{_model_forward.1} parent=39 // pred_check
        %p650 = pneg %p172
      $region46: #{_model_forward.1} parent=39 // pred_check_branch
        %652 = sbr.rel (%p650) target = $region48
      $region47: #{_model_forward.1} parent=39 // pred_region
        _
      $region48: #{_model_forward.1} parent=39 // pred_fallthru
        _
    $region40: #{_model_forward.1} parent=5 // pred_fallthru
      _
    %p653 = scmp.le.s32.totalorder 2, %s13
    // Predicated region
    $region49: #{_model_forward.1} parent=5 // pred_check
      %p654 = pneg %p653
    $region50: #{_model_forward.1} parent=5 // pred_check_branch
      %656 = sbr.rel (%p654) target = $region52
    $region51: #{_model_forward.1} parent=5 // pred_region
      %s657 = ssub.s32 %s13, 2
      // Predicated region
      $region53: #{_model_forward.1} parent=51 // pred_check
        %p658 = pneg %p152
      $region54: #{_model_forward.1} parent=51 // pred_check_branch
        %660 = sbr.rel (%p658) target = $region56
      $region55: #{_model_forward.1} parent=51 // pred_region
        %p661 = scmp.lt.s32.totalorder %s19, 1
        %s662 = scalar_select %p661, %s19, 1
        %s663 = smul.addr %s662, 2
        %s664 = smul.addr %s663, 8
        %s665 = scalar_lea.vmem %s5, %s664
      $region56: #{_model_forward.1} parent=51 // pred_fallthru
        _
      // Predicated region
      $region57: #{_model_forward.1} parent=51 // pred_check
        %p666 = pneg %p178
      $region58: #{_model_forward.1} parent=51 // pred_check_branch
        %668 = sbr.rel (%p666) target = $region60
      $region59: #{_model_forward.1} parent=51 // pred_region
        %p669 = scmp.lt.s32.totalorder %s19, 1
        %s670 = scalar_select %p669, %s19, 1
        %s671 = smul.addr %s670, 2
        %s672 = smul.addr %s671, 8
        %s673 = scalar_lea.vmem %s6, %s672
      $region60: #{_model_forward.1} parent=51 // pred_fallthru
        _
    $region52: #{_model_forward.1} parent=5 // pred_fallthru
      _
  $region6: #{_model_forward.1} parent=0 // loop_footer
    %s17 = sadd.s32 1, %s13
  $region7: #{_model_forward.1} parent=0 // loop_footer_branch
    %12 = sbr.rel target = $region3
  $region8: #{_model_forward.1} parent=0 // loop_exit
    _

</llo_original>
